<compile_context>
chip_gen: v6e
topology: v6e:2x2x1
jax: 0.10.0
libtpu: 0.0.40
codegen_flags: <defaults>
</compile_context>

<pallas_src>
import functools

import jax
import jax.numpy as jnp
from jax import lax
from jax.experimental import pallas as pl
from jax.experimental.pallas import tpu as pltpu


def _round_up(x, m):
    return ((x + m - 1) // m) * m


def _vmem_limit_bytes():
    """Scoped-VMEM budget: half of physical VMEM, capped at 64 MiB.

    v5e/v6e (128 MiB physical) -> 64 MiB; v7x (64 MiB per TC) -> 32 MiB.
    """
    try:
        cap = int(pltpu.get_tpu_info().vmem_capacity_bytes)
    except Exception:
        cap = 64 << 20                      # conservative (v7x-sized) fallback
    return max(16 << 20, min(cap // 2, 64 << 20))


def _pick_tile_n(n, c, itemsize, vmem_limit, gran):
    """Largest row tile whose streams fit in ~half the scoped-VMEM budget.

    Two (tile_n, C) streams (inputs + targets), double-buffered, in the source
    dtype, plus ~3 tile-sized f32 temporaries from the softmax math.  The other
    half of the budget is left for the resident alpha block, the accumulator
    and compiler scratch.
    """
    bytes_per_row = c * (2 * 2 * itemsize + 3 * 4)
    tile = (vmem_limit // 2) // max(bytes_per_row, 1)
    tile = max(gran, min(4096, (tile // gran) * gran))
    return min(tile, _round_up(n, gran))


def _focal_loss_kernel(inputs_ref, targets_ref, alpha_ref, out_ref, acc_ref, *,
                       gamma, n_rows, tile_n, tiles_per_core, total_tiles):
    c = pl.program_id(0)          # core-parallel axis
    i = pl.program_id(1)          # row-tile axis (reduction, per core)

    @pl.when(i == 0)
    def _init():
        acc_ref[...] = jnp.zeros_like(acc_ref)

    x = inputs_ref[...].astype(jnp.float32)     # (tile_n, C) logits
    t = targets_ref[...].astype(jnp.float32)    # (tile_n, C) targets

    # Global tile index. When total_tiles does not split evenly across cores
    # the trailing duplicate tiles are fully masked below; the clamped index is
    # only used for (always in-bounds) addressing.
    tile_idx = c * tiles_per_core + i
    tile_clamped = jnp.minimum(tile_idx, total_tiles - 1)

    # alpha rows for this tile, sliced from the resident (tile-aligned) block.
    a_start = pl.multiple_of(tile_clamped * tile_n, tile_n)
    a = alpha_ref[pl.ds(a_start, tile_n), :].astype(jnp.float32)   # (tile_n, 1)

    # Numerically stable softmax pieces; class axis (lanes) is the reduce axis.
    m = jnp.max(x, axis=1, keepdims=True)
    e = jnp.exp(x - m)
    denom = jnp.sum(e, axis=1, keepdims=True)        # (tile_n, 1)
    num = jnp.sum(e * t, axis=1, keepdims=True)      # (tile_n, 1)

    # probs only feeds the focal weight -> approx reciprocal (EUP vrcp) is fine;
    # log_p uses the exact log-sum-exp split.
    probs = num * pl.reciprocal(denom, approx=True)
    log_p = jnp.log(num) - jnp.log(denom)

    focal = (1.0 - probs) ** gamma                   # gamma is a Python int -> integer_pow
    batch_loss = -a * focal * log_p                  # (tile_n, 1)

    # Mask rows past N (trailing partial tile reads unspecified data; the
    # select keeps any inf/NaN there from contaminating the sum).
    row = tile_idx * tile_n + lax.broadcasted_iota(jnp.int32, batch_loss.shape, 0)
    acc_ref[...] += jnp.where(row < n_rows, batch_loss, 0.0)

    @pl.when(i == pl.num_programs(1) - 1)
    def _finalize():
        out_ref[...] = (jnp.sum(acc_ref[...], keepdims=True)
                        .reshape(1, 1, 1).astype(out_ref.dtype))


def focal_loss(inputs, targets, alpha, gamma=2, size_average=True,
               tile_n=None, num_cores=2):
    """inputs: (N, C) logits; targets: (N, C); alpha: (C, 1). Returns scalar f32.

    Accepts f32 or bf16 inputs/targets (streamed in their own dtype, cast to
    f32 inside the kernel).  `num_cores=2` uses both TensorCores on v7x; on
    1-TC chips (v5e/v6e) the extra grid axis just runs sequentially.
    """
    assert isinstance(gamma, int), "gamma must be a Python int (integer_pow lowering)"
    N, C = inputs.shape
    assert targets.shape == (N, C)
    assert alpha.shape == (C, 1)
    # The module's `-alpha * (1-probs)**gamma * log_p` broadcast ((C,1)*(N,1))
    # is only elementwise-well-defined when batch N == class_num C.
    assert N == C, "FocalLoss alpha broadcast requires batch N == class_num C"

    vmem_limit = _vmem_limit_bytes()
    itemsize = jnp.dtype(inputs.dtype).itemsize
    gran = 8 if itemsize >= 4 else 16            # sublane packing granularity
    if tile_n is None:
        tile_n = _pick_tile_n(N, C, itemsize, vmem_limit, gran)
    else:
        tile_n = max(gran, _round_up(int(tile_n), gran))

    total_tiles = pl.cdiv(N, tile_n)
    num_cores = max(1, min(int(num_cores), total_tiles))
    tiles_per_core = pl.cdiv(total_tiles, num_cores)

    # Pad only the tiny (C, 1) alpha so the resident block is tile-aligned; the
    # big (N, C) inputs/targets stream unpadded (partial last tile is masked).
    n_pad_alpha = total_tiles * tile_n
    if n_pad_alpha != C:
        alpha = jnp.pad(alpha, ((0, n_pad_alpha - C), (0, 0)))

    def tile_map(c, i):
        return (jnp.minimum(c * tiles_per_core + i, total_tiles - 1), 0)

    kernel = functools.partial(
        _focal_loss_kernel, gamma=gamma, n_rows=N, tile_n=tile_n,
        tiles_per_core=tiles_per_core, total_tiles=total_tiles)

    partials = pl.pallas_call(
        kernel,
        out_shape=jax.ShapeDtypeStruct((num_cores, 1, 1), jnp.float32),
        grid_spec=pltpu.PrefetchScalarGridSpec(
            num_scalar_prefetch=0,
            grid=(num_cores, tiles_per_core),
            in_specs=[
                pl.BlockSpec((tile_n, C), tile_map),                   # logits tile
                pl.BlockSpec((tile_n, C), tile_map),                   # targets tile
                pl.BlockSpec((n_pad_alpha, 1), lambda c, i: (0, 0)),   # resident alpha
            ],
            out_specs=pl.BlockSpec((1, 1, 1), lambda c, i: (c, 0, 0)),  # per-core partial
            scratch_shapes=[pltpu.VMEM((tile_n, 1), jnp.float32)],      # per-core row acc
        ),
        compiler_params=pltpu.CompilerParams(
            dimension_semantics=("parallel", "arbitrary"),
            vmem_limit_bytes=vmem_limit,
        ),
    )(inputs, targets, alpha)

    total = jnp.sum(partials)
    return total / N if size_average else total


def _focal_loss_ref(inputs, targets, alpha, gamma=2, size_average=True):
    p = jax.nn.softmax(inputs.astype(jnp.float32), axis=1)
    probs = jnp.sum(p * targets.astype(jnp.float32), axis=1, keepdims=True)
    log_p = jnp.log(probs)
    batch_loss = -alpha * (1.0 - probs) ** gamma * log_p
    return jnp.mean(batch_loss) if size_average else jnp.sum(batch_loss)


def _make_case(key, n):
    k_in, k_tgt, k_w = jax.random.split(key, 3)
    inputs = jax.random.normal(k_in, (n, n), dtype=jnp.float32)
    labels = jax.random.randint(k_tgt, (n,), 0, n)
    targets = jax.nn.one_hot(labels, n, dtype=jnp.float32)
    # alpha mimicking the script's construction from class counts:
    #   alpha_i = (sum(w) - w_i) / ((C+1) * sum(w))
    weights = jax.random.uniform(k_w, (n,), minval=1.0, maxval=10.0)
    wsum = jnp.sum(weights)
    alpha = ((wsum - weights) / ((n + 1) * wsum)).reshape(n, 1).astype(jnp.float32)
    return inputs, targets, alpha


if __name__ == "__main__":
    key = jax.random.PRNGKey(0)
    k0, k1 = jax.random.split(key)

    # Small case (single tile) — the original usage requires batch == class_num.
    inputs, targets, alpha = _make_case(k0, 8)
    loss = jax.block_until_ready(focal_loss(inputs, targets, alpha, gamma=2))
    ref = _focal_loss_ref(inputs, targets, alpha, gamma=2)
    assert jnp.allclose(loss, ref, rtol=1e-2, atol=1e-6), (loss, ref)

    # Multi-tile + two-core-slot case (exercises partial/duplicate-tile masking).
    inputs, targets, alpha = _make_case(k1, 48)
    loss = jax.block_until_ready(
        focal_loss(inputs, targets, alpha, gamma=2, tile_n=16))
    ref = _focal_loss_ref(inputs, targets, alpha, gamma=2)
    assert jnp.allclose(loss, ref, rtol=1e-2, atol=1e-6), (loss, ref)

    print("KERNEL_OK")
</pallas_src>

<mosaic_0001>
module attributes {stable_mosaic.version = 11 : i64} {
  func.func @_focal_loss_kernel(%arg0: i32, %arg1: i32, %arg2: memref<8x8xf32, #tpu.memory_space<vmem>>, %arg3: memref<8x8xf32, #tpu.memory_space<vmem>>, %arg4: memref<8x1xf32, #tpu.memory_space<vmem>>, %arg5: memref<1x1x1xf32, #tpu.memory_space<vmem>>, %arg6: memref<8x1xf32, #tpu.memory_space<vmem>>) attributes {dimension_semantics = [#tpu.dimension_semantics<parallel>, #tpu.dimension_semantics<arbitrary>], iteration_bounds = array<i64: 1, 1>, scalar_prefetch = 0 : i64, scratch_operands = 1 : i64, tpu.core_type = #tpu.core_type<tc>, window_params = [{transform_indices = @transform_0, window_bounds = array<i64: 8, 8>}, {transform_indices = @transform_1, window_bounds = array<i64: 8, 8>}, {pipeline_mode = #tpu.pipeline_mode<synchronous>, transform_indices = @transform_2, window_bounds = array<i64: 8, 1>}, {transform_indices = @transform_3, window_bounds = array<i64: 1, 1, 1>}]} {
    %c0_i32 = arith.constant 0 : i32
    %0 = arith.cmpi eq, %arg1, %c0_i32 : i32
    %1 = arith.extui %0 : i1 to i32
    %c0_i32_0 = arith.constant 0 : i32
    %2 = arith.cmpi ne, %1, %c0_i32_0 : i32
    scf.if %2 {
      %cst_19 = arith.constant 0.000000e+00 : f32
      %48 = vector.broadcast %cst_19 : f32 to vector<8x1xf32>
      %c0_20 = arith.constant 0 : index
      %c0_21 = arith.constant 0 : index
      %49 = vector.load %arg6[%c0_20, %c0_21] : memref<8x1xf32, #tpu.memory_space<vmem>>, vector<8x1xf32>
      tpu.vector_store %arg6[%c0_20, %c0_21], %48 {strides = array<i32>} : memref<8x1xf32, #tpu.memory_space<vmem>>, vector<8x1xf32>,
    } else {
    }
    %c0 = arith.constant 0 : index
    %c0_1 = arith.constant 0 : index
    %3 = vector.load %arg2[%c0, %c0_1] : memref<8x8xf32, #tpu.memory_space<vmem>>, vector<8x8xf32>
    %c0_2 = arith.constant 0 : index
    %c0_3 = arith.constant 0 : index
    %4 = vector.load %arg3[%c0_2, %c0_3] : memref<8x8xf32, #tpu.memory_space<vmem>>, vector<8x8xf32>
    %c1_i32 = arith.constant 1 : i32
    %5 = arith.muli %arg0, %c1_i32 : i32
    %6 = arith.addi %5, %arg1 : i32
    %c0_i32_4 = arith.constant 0 : i32
    %7 = arith.minsi %6, %c0_i32_4 : i32
    %c8_i32 = arith.constant 8 : i32
    %8 = arith.muli %7, %c8_i32 : i32
    %9 = tpu.assume_multiple %8, 8 : i32
    %10 = arith.index_cast %9 : i32 to index
    %c0_5 = arith.constant 0 : index
    %11 = vector.load %arg4[%10, %c0_5] : memref<8x1xf32, #tpu.memory_space<vmem>>, vector<8x1xf32>
    %cst = arith.constant dense<0xFF800000> : vector<8xf32>
    %12 = vector.multi_reduction <maximumf>, %3, %cst [1] : vector<8x8xf32> to vector<8xf32>
    %13 = vector.shape_cast %12 : vector<8xf32> to vector<8x1xf32>
    %14 = vector.broadcast %13 : vector<8x1xf32> to vector<8x8xf32>
    %15 = arith.subf %3, %14 : vector<8x8xf32>
    %16 = math.exp %15 : vector<8x8xf32>
    %cst_6 = arith.constant dense<0.000000e+00> : vector<8xf32>
    %17 = vector.multi_reduction <add>, %16, %cst_6 [1] : vector<8x8xf32> to vector<8xf32>
    %18 = vector.shape_cast %17 : vector<8xf32> to vector<8x1xf32>
    %19 = arith.mulf %16, %4 : vector<8x8xf32>
    %cst_7 = arith.constant dense<0.000000e+00> : vector<8xf32>
    %20 = vector.multi_reduction <add>, %19, %cst_7 [1] : vector<8x8xf32> to vector<8xf32>
    %21 = vector.shape_cast %20 : vector<8xf32> to vector<8x1xf32>
    %22 = tpu.reciprocal %18 {approx = true} : vector<8x1xf32> -> vector<8x1xf32>
    %23 = arith.mulf %21, %22 : vector<8x1xf32>
    %24 = math.log %21 : vector<8x1xf32>
    %25 = math.log %18 : vector<8x1xf32>
    %26 = arith.subf %24, %25 : vector<8x1xf32>
    %cst_8 = arith.constant 1.000000e+00 : f32
    %27 = vector.broadcast %cst_8 : f32 to vector<8x1xf32>
    %28 = arith.subf %27, %23 : vector<8x1xf32>
    %29 = arith.mulf %28, %28 : vector<8x1xf32>
    %cst_9 = arith.constant 0.000000e+00 : f32
    %30 = vector.broadcast %cst_9 : f32 to vector<8x1xf32>
    %31 = arith.subf %30, %11 : vector<8x1xf32>
    %32 = arith.mulf %31, %29 : vector<8x1xf32>
    %33 = arith.mulf %32, %26 : vector<8x1xf32>
    %c8_i32_10 = arith.constant 8 : i32
    %34 = arith.muli %6, %c8_i32_10 : i32
    %35 = tpu.iota {dimensions = array<i32: 0>} : vector<8x1xi32>
    %36 = vector.broadcast %34 : i32 to vector<8x1xi32>
    %37 = arith.addi %36, %35 : vector<8x1xi32>
    %c0_11 = arith.constant 0 : index
    %c0_12 = arith.constant 0 : index
    %38 = vector.load %arg6[%c0_11, %c0_12] : memref<8x1xf32, #tpu.memory_space<vmem>>, vector<8x1xf32>
    %c8_i32_13 = arith.constant 8 : i32
    %39 = vector.broadcast %c8_i32_13 : i32 to vector<8x1xi32>
    %40 = arith.cmpi slt, %37, %39 : vector<8x1xi32>
    %cst_14 = arith.constant 0.000000e+00 : f32
    %41 = vector.broadcast %cst_14 : f32 to vector<8x1xf32>
    %42 = arith.select %40, %33, %41 : vector<8x1xi1>, vector<8x1xf32>
    %43 = arith.addf %38, %42 : vector<8x1xf32>
    %c0_15 = arith.constant 0 : index
    %c0_16 = arith.constant 0 : index
    %44 = vector.load %arg6[%c0_15, %c0_16] : memref<8x1xf32, #tpu.memory_space<vmem>>, vector<8x1xf32>
    tpu.vector_store %arg6[%c0_15, %c0_16], %43 {strides = array<i32>} : memref<8x1xf32, #tpu.memory_space<vmem>>, vector<8x1xf32>,
    %c0_i32_17 = arith.constant 0 : i32
    %45 = arith.cmpi eq, %arg1, %c0_i32_17 : i32
    %46 = arith.extui %45 : i1 to i32
    %c0_i32_18 = arith.constant 0 : i32
    %47 = arith.cmpi ne, %46, %c0_i32_18 : i32
    scf.if %47 {
      %c0_19 = arith.constant 0 : index
      %c0_20 = arith.constant 0 : index
      %48 = vector.load %arg6[%c0_19, %c0_20] : memref<8x1xf32, #tpu.memory_space<vmem>>, vector<8x1xf32>
      %49 = vector.shape_cast %48 : vector<8x1xf32> to vector<1x8x1xf32>
      %cst_21 = arith.constant dense<0.000000e+00> : vector<1xf32>
      %50 = vector.multi_reduction <add>, %49, %cst_21 [1, 2] : vector<1x8x1xf32> to vector<1xf32>
      %51 = vector.shape_cast %50 : vector<1xf32> to vector<1x1x1xf32>
      %52 = vector.extract %51[0, 0, 0] : f32 from vector<1x1x1xf32>
      %53 = vector.broadcast %52 : f32 to vector<1x1xf32>
      %54 = vector.shape_cast %53 : vector<1x1xf32> to vector<1x1x1xf32>
      %c0_22 = arith.constant 0 : index
      %c0_23 = arith.constant 0 : index
      %c0_24 = arith.constant 0 : index
      %55 = vector.load %arg5[%c0_22, %c0_23, %c0_24] : memref<1x1x1xf32, #tpu.memory_space<vmem>>, vector<1x1x1xf32>
      tpu.vector_store %arg5[%c0_22, %c0_23, %c0_24], %54 {strides = array<i32>} : memref<1x1x1xf32, #tpu.memory_space<vmem>>, vector<1x1x1xf32>,
    } else {
    }
    return
  }
  func.func @transform_0(%arg0: i32, %arg1: i32) -> (i32, i32) {
    %c1_i32 = arith.constant 1 : i32
    %0 = arith.muli %arg0, %c1_i32 : i32
    %1 = arith.addi %0, %arg1 : i32
    %c0_i32 = arith.constant 0 : i32
    %2 = arith.minsi %1, %c0_i32 : i32
    %c0_i32_0 = arith.constant 0 : i32
    %c0_i32_1 = arith.constant 0 : i32
    return %2, %c0_i32_0 : i32, i32
  }
  func.func @transform_1(%arg0: i32, %arg1: i32) -> (i32, i32) {
    %c1_i32 = arith.constant 1 : i32
    %0 = arith.muli %arg0, %c1_i32 : i32
    %1 = arith.addi %0, %arg1 : i32
    %c0_i32 = arith.constant 0 : i32
    %2 = arith.minsi %1, %c0_i32 : i32
    %c0_i32_0 = arith.constant 0 : i32
    %c0_i32_1 = arith.constant 0 : i32
    return %2, %c0_i32_0 : i32, i32
  }
  func.func @transform_2(%arg0: i32, %arg1: i32) -> (i32, i32) {
    %c0_i32 = arith.constant 0 : i32
    %c0_i32_0 = arith.constant 0 : i32
    %c0_i32_1 = arith.constant 0 : i32
    return %c0_i32, %c0_i32_0 : i32, i32
  }
  func.func @transform_3(%arg0: i32, %arg1: i32) -> (i32, i32, i32) {
    %c0_i32 = arith.constant 0 : i32
    %c0_i32_0 = arith.constant 0 : i32
    %c0_i32_1 = arith.constant 0 : i32
    return %arg0, %c0_i32, %c0_i32_0 : i32, i32, i32
  }
}

</mosaic_0001>

<llo_original>
// kernel: tpu_custom_call.1
$region0: #{tpu_custom_call.1}
  #allocation0 [shape = 'u32[]', space=smem, size = 0x4, offset = 0x4, fixed_abs, tag = 'smem constant byte address 0x4 - core index']
  #allocation1 [shape = 'u32[144,128]{1,0:T(1,128)}', space=vmem, size = 0x12000, scoped, tag = 'internal scratch']
  #allocation2 [shape = 'f32[8,1]{1,0:T(8,128)}', space=vmem, size = 0x1000, scoped, tag = 'scratch operand']
  %s0 = inlined_call_operand.vmem [shape: f32[8,8], index: 0, kind: input, shape index: {}]
  %s1 = inlined_call_operand.hbm [shape: f32[8,8], index: 1, kind: input, shape index: {}]
  %s2 = inlined_call_operand.vmem [shape: f32[8,1], index: 2, kind: input, shape index: {}]
  %s3 = inlined_call_operand.hbm [shape: f32[1,1,1], index: 3, kind: output, shape index: {}]
  %s4 = sld [smem:[#allocation0]]
  $region34: #{tpu_custom_call.1} parent=0
    _
  %s6 = ssub.s32 1, %s4
  %s7 = scalar_select 0, %s6, %s4
  $region1: #{tpu_custom_call.1} parent=0
    #allocation3 [shape = 'u8[4096]{0}', space=vmem, size = 0x1000, scoped, tag = 'input window, operand 1, single buffered']
    #allocation4 [shape = 's32[1]{0}', space=sflag, size = 0x4, scoped, tag = 'scoped memory for tpu_custom_call.1']
    #allocation5 [shape = 's32[1]{0}', space=sflag, size = 0x4, scoped, tag = 'scoped memory for tpu_custom_call.1']
    #allocation6 [shape = 'u8[512]{0}', space=vmem, size = 0x400, scoped, tag = 'output window, operand 0, single buffered']
    %8 = vsyncpa [#allocation4], 0
    %9 = vsyncpa [#allocation5], 0
    // Predicated region
    $region2: #{tpu_custom_call.1} parent=1 // pred_check
      _
    $region3: #{tpu_custom_call.1} parent=1 // pred_check_branch
      %11 = sbr.rel (0) target = $region5
    $region4: #{tpu_custom_call.1} parent=1 // pred_region
      %s12 = sadd.s32 0, 0
      %p13 = scmp.lt.s32.totalorder %s12, 0
      %s14 = scalar_select %p13, %s12, 0
      %p15 = scmp.lt.s32.totalorder %s14, 0
      %s16 = scalar_select %p15, %s14, 0
      %s17 = smul.addr %s16, 8
      %s18 = scalar_lea.vmem %s0, %s17
      %s19 = sadd.s32 0, 0
      %p20 = scmp.lt.s32.totalorder %s19, 0
      %s21 = scalar_select %p20, %s19, 0
    $region5: #{tpu_custom_call.1} parent=1 // pred_fallthru
      _
    // Predicated region
    $region6: #{tpu_custom_call.1} parent=1 // pred_check
      _
    $region7: #{tpu_custom_call.1} parent=1 // pred_check_branch
      %23 = sbr.rel (0) target = $region9
    $region8: #{tpu_custom_call.1} parent=1 // pred_region
      %s24 = sadd.s32 0, 0
      %p25 = scmp.lt.s32.totalorder %s24, 0
      %s26 = scalar_select %p25, %s24, 0
      %s28 = ssub.s32 128, 128
      %29 = vsyncadd [#allocation4], %s28
      %s30 = smul.addr %s26, 128
      %s31 = scalar_lea.hbm %s1, %s30
      %s33 = sshll.u32 [#allocation3], 4
      %s34 = int_to_ptr.vmem [resolvable:$true] %s33
      %36 = dma.hbm_to_vmem [thread:$0]  %s31, 128, %s34, [#allocation4]
    $region9: #{tpu_custom_call.1} parent=1 // pred_fallthru
      _
    // Predicated region
    $region10: #{tpu_custom_call.1} parent=1 // pred_check
      _
    $region11: #{tpu_custom_call.1} parent=1 // pred_check_branch
      %38 = sbr.rel (0) target = $region13
    $region12: #{tpu_custom_call.1} parent=1 // pred_region
      _
    $region13: #{tpu_custom_call.1} parent=1 // pred_fallthru
      _
    // Predicated region
    $region14: #{tpu_custom_call.1} parent=1 // pred_check
      _
    $region15: #{tpu_custom_call.1} parent=1 // pred_check_branch
      %40 = sbr.rel (0) target = $region17
    $region16: #{tpu_custom_call.1} parent=1 // pred_region
      %41 = dma.done [#allocation4], 128
    $region17: #{tpu_custom_call.1} parent=1 // pred_fallthru
      _
    %s42 = sadd.s32 0, 0
    %p43 = scmp.lt.s32.totalorder %s42, 0
    %s44 = scalar_select %p43, %s42, 0
    %p45 = scmp.lt.s32.totalorder %s44, 0
    %s46 = scalar_select %p45, %s44, 0
    %s47 = smul.addr %s46, 8
    %s48 = scalar_lea.vmem %s0, %s47
    %s49 = sadd.s32 0, 0
    %p50 = scmp.lt.s32.totalorder %s49, 0
    %s51 = scalar_select %p50, %s49, 0
    %p52 = scmp.lt.s32.totalorder %s51, 0
    %s53 = scalar_select %p52, %s51, 0
    %s54 = smul.addr %s53, 8
    %s55 = scalar_lea.vmem %s0, %s54
    %s56 = sadd.s32 0, 0
    %p57 = scmp.lt.s32.totalorder %s56, 0
    %s58 = scalar_select %p57, %s56, 0
    %s59 = sadd.s32 0, 0
    %p60 = scmp.lt.s32.totalorder %s59, 0
    %s61 = scalar_select %p60, %s59, 0
    %p62 = scmp.eq.s32.totalorder 0, 0
    // Predicated region
    $region18: #{tpu_custom_call.1} parent=1 // pred_check
      %p63 = pneg %p62
    $region19: #{tpu_custom_call.1} parent=1 // pred_check_branch
      %65 = sbr.rel (%p63) target = $region21
    $region20: #{tpu_custom_call.1} parent=1 // pred_region
      %vm66 = vcmask 7168
      %67 = vst.msk [vmem:[#allocation2] sm:$0xff] %vm66, 0.0
    $region21: #{tpu_custom_call.1} parent=1 // pred_fallthru
      _
    %v68 = vld [vmem:[%s55] sm:$0xff]
    %v69 = vld [vmem:[#allocation3] sm:$0xff]
    %s70 = sadd.s32 0, 0
    %p71 = scmp.lt.s32.totalorder %s70, 0
    %s72 = scalar_select %p71, %s70, 0
    %s73 = smul.u32 %s72, 8
    %s74 = scalar_lea.vmem %s2, %s73
    %v75 = vld [vmem:[%s74] sm:$0xff]
    %vm76 = vcmask 64512
    %v77 = vsel %vm76, %v68, -inf
    %78 = vmax.xlane.f32.xlu0 %v77
    %v79 = vpop.xlane.xlu0 %78
    %v80 = vsub.f32 %v68, %v79
    %v81 = vmul.f32 %v80, 1.442695
    %v82 = vpow.pop %v81
    %v83 = vsel %vm76, %v82, 0.0
    %84 = vadd.xlane.f32.xlu0 %v83
    %v85 = vpop.xlane.xlu0 %84
    %v86 = vmul.f32 %v82, %v69
    %v87 = vsel %vm76, %v86, 0.0
    %88 = vadd.xlane.f32.xlu0 %v87
    %v89 = vpop.xlane.xlu0 %88
    %v90 = vrcp.pop %v85
    %v91 = vmul.f32 %v89, %v90
    %v92 = vlog2.pop %v89
    %v93 = vmul.f32 %v92, 0.6931472
    %v94 = vlog2.pop %v85
    %v95 = vmul.f32 %v94, 0.6931472
    %v96 = vsub.f32 %v93, %v95
    %v97 = vsub.f32 1.0, %v91
    %v98 = vmul.f32 %v97, %v97
    %v99 = vsub.f32 0.0, %v75
    %v100 = vmul.f32 %v99, %v98
    %v101 = vmul.f32 %v100, %v96
    %s102 = smul.u32 %s70, 8
    %v103 = vlaneseq
    %v104 = vshrl.u32 %v103, 7
    %v105 = vstv %s102
    %v106 = vadd.s32 %v105, %v104
    %v107 = vld [vmem:[#allocation2] sm:$0xff]
    %vm108 = vcmp.lt.s32.totalorder %v106, 8
    %v109 = vsel %vm108, %v101, 0.0
    %v110 = vadd.f32 %v107, %v109
    %vm111 = vcmask 7168
    %112 = vst.msk [vmem:[#allocation2] sm:$0xff] %vm111, %v110
    // Predicated region
    $region22: #{tpu_custom_call.1} parent=1 // pred_check
      %p113 = pneg %p62
    $region23: #{tpu_custom_call.1} parent=1 // pred_check_branch
      %115 = sbr.rel (%p113) target = $region25
    $region24: #{tpu_custom_call.1} parent=1 // pred_region
      %v116 = vld [vmem:[#allocation2] sm:$0xff]
      %v117 = vsel %vm111, %v116, 0.0
      %118 = vadd.xlane.f32.xlu0 %v117
      %v119 = vpop.xlane.xlu0 %118
      %v120 = vrot.slane %v119, 4
      %v121 = vadd.f32 %v119, %v120
      %v122 = vrot.slane %v121, 2
      %v123 = vadd.f32 %v121, %v122
      %v124 = vrot.slane %v123, 1
      %v125 = vadd.f32 %v123, %v124
      %s126 = vtos %v125
      %v127 = vstv %s126
      %vm128 = vcmask 0
      %129 = vst.msk [vmem:[#allocation6] sm:$0x1] %vm128, %v127
    $region25: #{tpu_custom_call.1} parent=1 // pred_fallthru
      _
    // Predicated region
    $region26: #{tpu_custom_call.1} parent=1 // pred_check
      _
    $region27: #{tpu_custom_call.1} parent=1 // pred_check_branch
      %131 = sbr.rel (0) target = $region29
    $region28: #{tpu_custom_call.1} parent=1 // pred_region
      %s133 = ssub.s32 16, 16
      %134 = vsyncadd [#allocation5], %s133
      %s136 = sshll.u32 [#allocation6], 4
      %s137 = int_to_ptr.vmem [resolvable:$true] %s136
      %139 = dma.vmem_to_hbm [thread:$0]  %s137, 16, %s3, [#allocation5]
    $region29: #{tpu_custom_call.1} parent=1 // pred_fallthru
      _
    // Predicated region
    $region30: #{tpu_custom_call.1} parent=1 // pred_check
      _
    $region31: #{tpu_custom_call.1} parent=1 // pred_check_branch
      %141 = sbr.rel (0) target = $region33
    $region32: #{tpu_custom_call.1} parent=1 // pred_region
      %142 = dma.done [#allocation5], 16
    $region33: #{tpu_custom_call.1} parent=1 // pred_fallthru
      _
    %143 = vsyncpa [#allocation4], 1
    %144 = vsyncpa [#allocation5], 1

</llo_original>
